<compile_context>
chip_gen: v7x
topology: tpu7x:2x2x1
jax: 0.10.0
libtpu: 0.0.40
codegen_flags: <defaults>
</compile_context>

<pallas_src>
import jax
import jax.numpy as jnp
from jax.experimental import pallas as pl
from jax.experimental.pallas import tpu as pltpu


def _feature_order(world_size: int, stagger: int):
    # Mirrors torchrec _recat's feature_order (stagger handling).
    return [
        x + (world_size // stagger) * y
        for x in range(world_size // stagger)
        for y in range(stagger)
    ]


def _is_v7x() -> bool:
    try:
        kind = jax.devices()[0].device_kind.lower()
    except Exception:
        return False
    return ("v7" in kind) or ("tpu7" in kind) or ("7x" in kind)


def _pick_tile_f(f_total: int, bytes_per_feature: int, target_bytes: int) -> int:
    """Largest divisor of F whose per-step moved bytes fit `target_bytes`.

    With the 4-D (W, F, B, 1) lengths layout the (8,128) rule never
    constrains tile_f (last two block dims are always full extents), so any
    divisor of F is legal; the worst-case fallback is tile_f = 1, never
    tile_f = F_total (which could blow VMEM for large F*B*Lmax).
    """
    divisors = [t for t in range(1, f_total + 1) if f_total % t == 0]
    fitting = [t for t in divisors if t * bytes_per_feature <= target_bytes]
    return max(fitting) if fitting else 1


# ----------------------------- Pallas kernels ------------------------------


def _a2a_kernel(len_ref, val_ref, out_val_ref):
    # len_ref: (tile_f, B, 1) ; val_ref / out_val_ref: (tile_f, B, Lmax)
    lengths = len_ref[...]
    col = jax.lax.broadcasted_iota(jnp.int32, val_ref.shape, 2)
    vals = val_ref[...]
    out_val_ref[...] = jnp.where(col < lengths, vals, jnp.zeros_like(vals))


def _a2a_kernel_weighted(len_ref, val_ref, w_ref, out_val_ref, out_w_ref):
    lengths = len_ref[...]
    col = jax.lax.broadcasted_iota(jnp.int32, val_ref.shape, 2)
    mask = col < lengths
    vals = val_ref[...]
    wts = w_ref[...]
    out_val_ref[...] = jnp.where(mask, vals, jnp.zeros_like(vals))
    out_w_ref[...] = jnp.where(mask, wts, jnp.zeros_like(wts))


# ------------------------------ Pallas wrapper ------------------------------


def kjt_all_to_all(lengths, values, weights, *, features_per_rank,
                   world_size, stagger, target_block_bytes=None):
    """Simulated KJTAllToAll + recat for ALL destination ranks in one call.

    lengths: (W, F_total, B) int32
    values : (W, F_total, B, Lmax)
    weights: (W, F_total, B, Lmax) or None
    Returns a list (one entry per destination rank) of tuples
      (lengths (F_r, W*B), values (F_r, W*B, Lmax), weights or None).
    """
    W, F_total, B = lengths.shape
    Lmax = values.shape[-1]
    assert W == world_size and F_total == sum(features_per_rank)
    order = _feature_order(world_size, stagger)
    identity_order = order == list(range(world_size))
    has_w = weights is not None
    v7x = _is_v7x()

    if target_block_bytes is None:
        # v7x: 3.2 TB/s HBM -> a 512 KiB step moves in ~0.3 us, comparable to
        # the ~0.35 us fixed per-grid-step cost; use ~2 MiB blocks there.
        # v5e/v6e already run >=85% of HBM roofline at 512 KiB.
        target_block_bytes = (2 << 20) if v7x else (512 << 10)

    bytes_per_feature = B * Lmax * values.dtype.itemsize
    if has_w:
        bytes_per_feature += B * Lmax * weights.dtype.itemsize
    tile_f = _pick_tile_f(F_total, bytes_per_feature, target_block_bytes)
    n_fb = F_total // tile_f

    # 4-D lengths: last two block dims (B, 1) are full extents -> tile_f is
    # unconstrained by the (8,128) rule, and B sits on sublanes matching the
    # values layout (length compare is a pure lane splat).
    lengths4 = lengths.reshape(W, F_total, B, 1)

    # Pipeline depth for the bulk arrays: no compute to hide DMAs behind, so
    # on v7x triple-buffer to overlap output writeback with the next step's
    # input prefetch.  Default double buffering elsewhere.
    buf_count = 3 if v7x else 2
    bulk_mode = pl.Buffered(buf_count) if buf_count != 2 else None

    # Grid: W leading (always >= 2 in a real AlltoAll) so the v7x megacore
    # split never gets a degenerate size-1 leading axis when n_fb == 1.
    if identity_order:
        # stagger==1 (or trivial order): skip the scalar-prefetch array.
        def len_idx(j, fi):
            return (j, fi, 0, 0)

        def val_idx(j, fi):
            return (j, fi, 0, 0)

        def out_idx(j, fi):
            return (fi, j, 0, 0)

        num_prefetch = 0
        prefetch_args = ()
        kernel = _a2a_kernel_weighted if has_w else _a2a_kernel
    else:
        # General staggered recat: order permutation drives the index_map.
        def len_idx(j, fi, order_ref):
            return (order_ref[j], fi, 0, 0)

        def val_idx(j, fi, order_ref):
            return (order_ref[j], fi, 0, 0)

        def out_idx(j, fi, order_ref):
            return (fi, j, 0, 0)

        num_prefetch = 1
        prefetch_args = (jnp.asarray(order, dtype=jnp.int32),)
        body = _a2a_kernel_weighted if has_w else _a2a_kernel

        def kernel(order_ref, *refs):
            return body(*refs)

    def bulk_in_spec(idx_map):
        kw = {"pipeline_mode": bulk_mode} if bulk_mode is not None else {}
        return pl.BlockSpec((pl.Squeezed(), tile_f, B, Lmax), idx_map, **kw)

    def bulk_out_spec(idx_map):
        kw = {"pipeline_mode": bulk_mode} if bulk_mode is not None else {}
        return pl.BlockSpec((tile_f, pl.Squeezed(), B, Lmax), idx_map, **kw)

    in_specs = [pl.BlockSpec((pl.Squeezed(), tile_f, B, 1), len_idx),
                bulk_in_spec(val_idx)]
    args = [lengths4, values]
    out_shapes = [jax.ShapeDtypeStruct((F_total, W, B, Lmax), values.dtype)]
    out_specs = [bulk_out_spec(out_idx)]
    if has_w:
        in_specs.append(bulk_in_spec(val_idx))
        args.append(weights)
        out_shapes.append(jax.ShapeDtypeStruct((F_total, W, B, Lmax),
                                               weights.dtype))
        out_specs.append(bulk_out_spec(out_idx))

    # VMEM budget from the actual buffered footprint (bulk in + out, values +
    # weights, plus the tiny lengths block) with headroom for Mosaic internal
    # scratch; capped below the v7x 64 MiB physical VMEM.
    val_blk = tile_f * B * Lmax * values.dtype.itemsize
    w_blk = tile_f * B * Lmax * weights.dtype.itemsize if has_w else 0
    len_blk = tile_f * B * lengths.dtype.itemsize
    needed = buf_count * 2 * (val_blk + w_blk) + 2 * len_blk + (8 << 20)
    vmem_limit = int(min(48 << 20, max(32 << 20, needed)))

    # NOTE: each output writeback run is B*Lmax*itemsize contiguous bytes
    # (4 KiB in the tests).  For real workloads with tiny B or 16-bit ids,
    # revisit the (F, W, B, Lmax) output order so runs stay >= ~2 KiB.
    outs = pl.pallas_call(
        kernel,
        out_shape=tuple(out_shapes),
        grid_spec=pltpu.PrefetchScalarGridSpec(
            num_scalar_prefetch=num_prefetch,
            grid=(W, n_fb),
            in_specs=in_specs,
            out_specs=tuple(out_specs)),
        compiler_params=pltpu.CompilerParams(
            # Every grid cell writes a distinct output block (no accumulation)
            # -> safe to shard over v7x's 2 TensorCores; neutral on v5e/v6e.
            dimension_semantics=("parallel", "parallel"),
            vmem_limit_bytes=vmem_limit),
    )(*prefetch_args, *args)

    out_val_all = outs[0]                              # (F_total, W, B, Lmax)
    out_w_all = outs[1] if has_w else None

    # Lengths AlltoAll + recat is tiny and lane-sparse -> plain JAX (keeping
    # it out of the pallas_call avoids masked (.., B) stores + per-step DMAs).
    order_idx = jnp.asarray(order, dtype=jnp.int32)
    out_len_all = jnp.transpose(lengths[order_idx], (1, 0, 2))   # (F, W, B)

    per_rank = []
    off = 0
    for r in range(world_size):
        F_r = features_per_rank[r]
        out_len = out_len_all[off:off + F_r].reshape(F_r, W * B)
        out_val = out_val_all[off:off + F_r].reshape(F_r, W * B, Lmax)
        out_w = (out_w_all[off:off + F_r].reshape(F_r, W * B, Lmax)
                 if has_w else None)
        per_rank.append((out_len, out_val, out_w))
        off += F_r
    return per_rank


# --------------------------- Module-level wrapper ---------------------------


class SparseFeaturesAllToAll:
    """JAX/Pallas analogue of torchrec SparseFeaturesAllToAll (no parameters).

    # TODO(synk): the dist.ProcessGroup AlltoAll / Awaitable two-phase
    # (lengths-then-indices) staging has no single-device Pallas equivalent;
    # the collective is simulated as a world-stacked gather on one chip.
    """

    def __init__(self, world_size, id_list_features_per_rank,
                 id_score_list_features_per_rank, stagger=1):
        self.world_size = world_size
        self.id_list_fpr = list(id_list_features_per_rank)
        self.id_score_fpr = list(id_score_list_features_per_rank)
        self.stagger = stagger

    def __call__(self, id_list_lengths, id_list_values,
                 id_score_lengths, id_score_values, id_score_weights):
        # id_list_lengths: (W, Fi, B), id_list_values: (W, Fi, B, Lmax), etc.
        id_list_out = kjt_all_to_all(
            id_list_lengths, id_list_values, None,
            features_per_rank=self.id_list_fpr,
            world_size=self.world_size, stagger=self.stagger)
        id_score_out = kjt_all_to_all(
            id_score_lengths, id_score_values, id_score_weights,
            features_per_rank=self.id_score_fpr,
            world_size=self.world_size, stagger=self.stagger)
        return id_list_out, id_score_out


# -------------------------------- reference ---------------------------------


def _ref_rank(lengths, values, weights, fpr, rank, world_size, stagger):
    order = _feature_order(world_size, stagger)
    off = sum(fpr[:rank])
    F_r = fpr[rank]
    Lmax = values.shape[-1]
    len_rows, val_rows, w_rows = [], [], []
    for i in range(F_r):
        lr, vr, wr = [], [], []
        for w in order:
            l = lengths[w, off + i]                           # (B,)
            mask = jnp.arange(Lmax)[None, :] < l[:, None]
            lr.append(l)
            vr.append(jnp.where(mask, values[w, off + i], 0))
            if weights is not None:
                wr.append(jnp.where(mask, weights[w, off + i], 0.0))
        len_rows.append(jnp.concatenate(lr))
        val_rows.append(jnp.concatenate(vr, axis=0))
        if weights is not None:
            w_rows.append(jnp.concatenate(wr, axis=0))
    return (jnp.stack(len_rows), jnp.stack(val_rows),
            jnp.stack(w_rows) if weights is not None else None)


# ----------------------------------- main ------------------------------------


def _run_case(W, B, Lmax, id_list_fpr, id_score_fpr, stagger, seed):
    Fi, Fs = sum(id_list_fpr), sum(id_score_fpr)
    key = jax.random.PRNGKey(seed)
    k1, k2, k3, k4, k5 = jax.random.split(key, 5)
    id_lengths = jax.random.randint(k1, (W, Fi, B), 0, 6, dtype=jnp.int32)
    id_values = jax.random.randint(k2, (W, Fi, B, Lmax), 0, 1000,
                                   dtype=jnp.int32)
    sc_lengths = jax.random.randint(k3, (W, Fs, B), 0, 6, dtype=jnp.int32)
    sc_values = jax.random.randint(k4, (W, Fs, B, Lmax), 0, 1000,
                                   dtype=jnp.int32)
    sc_weights = jax.random.uniform(k5, (W, Fs, B, Lmax), dtype=jnp.float32)

    sfa2a = SparseFeaturesAllToAll(W, id_list_fpr, id_score_fpr,
                                   stagger=stagger)
    id_list_out, id_score_out = sfa2a(id_lengths, id_values,
                                      sc_lengths, sc_values, sc_weights)
    jax.block_until_ready([id_list_out, id_score_out])

    # correctness vs. pure-JAX reference of AlltoAll + recat semantics
    for r in range(W):
        rl, rv, _ = _ref_rank(id_lengths, id_values, None,
                              id_list_fpr, r, W, stagger)
        ol, ov, _ = id_list_out[r]
        assert bool(jnp.array_equal(rl, ol)), f"id_list lengths rank {r}"
        assert bool(jnp.array_equal(rv, ov)), f"id_list values rank {r}"

        rl, rv, rw = _ref_rank(sc_lengths, sc_values, sc_weights,
                               id_score_fpr, r, W, stagger)
        ol, ov, ow = id_score_out[r]
        assert bool(jnp.array_equal(rl, ol)), f"id_score lengths rank {r}"
        assert bool(jnp.array_equal(rv, ov)), f"id_score values rank {r}"
        assert bool(jnp.allclose(rw, ow)), f"id_score weights rank {r}"


if __name__ == "__main__":
    # stagger == 1 (identity recat order): no scalar-prefetch path, as in the
    # torchrec docstring example (id_list_fpr=[2,1], id_score_fpr=[1,3]).
    _run_case(W=2, B=8, Lmax=128, id_list_fpr=[2, 1], id_score_fpr=[1, 3],
              stagger=1, seed=0)
    # stagger == 2 (non-identity order [0,2,1,3]): scalar-prefetched index_map.
    _run_case(W=4, B=8, Lmax=128, id_list_fpr=[1, 2, 1, 1],
              id_score_fpr=[2, 1, 1, 1], stagger=2, seed=1)

    print("KERNEL_OK")
</pallas_src>

<mosaic_0001>
module attributes {stable_mosaic.version = 11 : i64} {
  func.func @_a2a_kernel(%arg0: i32, %arg1: i32, %arg2: memref<1x3x8x1xi32, #tpu.memory_space<vmem>>, %arg3: memref<1x3x8x128xi32, #tpu.memory_space<vmem>>, %arg4: memref<3x1x8x128xi32, #tpu.memory_space<vmem>>) attributes {dimension_semantics = [#tpu.dimension_semantics<parallel>, #tpu.dimension_semantics<parallel>], iteration_bounds = array<i64: 2, 1>, scalar_prefetch = 0 : i64, scratch_operands = 0 : i64, tpu.core_type = #tpu.core_type<tc>, window_params = [{transform_indices = @transform_0, window_bounds = array<i64: 1, 3, 8, 1>}, {transform_indices = @transform_1, window_bounds = array<i64: 1, 3, 8, 128>}, {transform_indices = @transform_2, window_bounds = array<i64: 3, 1, 8, 128>}]} {
    %c0 = arith.constant 0 : index
    %c0_0 = arith.constant 0 : index
    %c0_1 = arith.constant 0 : index
    %c0_2 = arith.constant 0 : index
    %0 = vector.load %arg2[%c0, %c0_0, %c0_1, %c0_2] : memref<1x3x8x1xi32, #tpu.memory_space<vmem>>, vector<1x3x8x1xi32>
    %1 = vector.shape_cast %0 : vector<1x3x8x1xi32> to vector<3x8x1xi32>
    %2 = tpu.iota {dimensions = array<i32: 2>} : vector<3x8x128xi32>
    %c0_3 = arith.constant 0 : index
    %c0_4 = arith.constant 0 : index
    %c0_5 = arith.constant 0 : index
    %c0_6 = arith.constant 0 : index
    %3 = vector.load %arg3[%c0_3, %c0_4, %c0_5, %c0_6] : memref<1x3x8x128xi32, #tpu.memory_space<vmem>>, vector<1x3x8x128xi32>
    %4 = vector.shape_cast %3 : vector<1x3x8x128xi32> to vector<3x8x128xi32>
    %5 = vector.broadcast %1 : vector<3x8x1xi32> to vector<3x8x128xi32>
    %6 = arith.cmpi slt, %2, %5 : vector<3x8x128xi32>
    %c0_i32 = arith.constant 0 : i32
    %7 = vector.broadcast %c0_i32 : i32 to vector<3x8x128xi32>
    %8 = arith.select %6, %4, %7 : vector<3x8x128xi1>, vector<3x8x128xi32>
    %c0_7 = arith.constant 0 : index
    %c0_8 = arith.constant 0 : index
    %c0_9 = arith.constant 0 : index
    %c0_10 = arith.constant 0 : index
    %9 = vector.load %arg4[%c0_7, %c0_8, %c0_9, %c0_10] : memref<3x1x8x128xi32, #tpu.memory_space<vmem>>, vector<3x1x8x128xi32>
    %10 = vector.shape_cast %9 : vector<3x1x8x128xi32> to vector<3x8x128xi32>
    %11 = vector.shape_cast %8 : vector<3x8x128xi32> to vector<3x1x8x128xi32>
    tpu.vector_store %arg4[%c0_7, %c0_8, %c0_9, %c0_10], %11 {strides = array<i32>} : memref<3x1x8x128xi32, #tpu.memory_space<vmem>>, vector<3x1x8x128xi32>,
    return
  }
  func.func @transform_0(%arg0: i32, %arg1: i32) -> (i32, i32, i32, i32) {
    %c0_i32 = arith.constant 0 : i32
    %c0_i32_0 = arith.constant 0 : i32
    %c0_i32_1 = arith.constant 0 : i32
    return %arg0, %arg1, %c0_i32, %c0_i32_0 : i32, i32, i32, i32
  }
  func.func @transform_1(%arg0: i32, %arg1: i32) -> (i32, i32, i32, i32) {
    %c0_i32 = arith.constant 0 : i32
    %c0_i32_0 = arith.constant 0 : i32
    %c0_i32_1 = arith.constant 0 : i32
    return %arg0, %arg1, %c0_i32, %c0_i32_0 : i32, i32, i32, i32
  }
  func.func @transform_2(%arg0: i32, %arg1: i32) -> (i32, i32, i32, i32) {
    %c0_i32 = arith.constant 0 : i32
    %c0_i32_0 = arith.constant 0 : i32
    %c0_i32_1 = arith.constant 0 : i32
    return %arg1, %arg0, %c0_i32, %c0_i32_0 : i32, i32, i32, i32
  }
}

</mosaic_0001>

<llo_original>
// kernel: tpu_custom_call.1
$region0: #{tpu_custom_call.1}
  #allocation0 [shape = 'u32[]', space=smem, size = 0x4, offset = 0x4, fixed_abs, tag = 'smem constant byte address 0x4 - core index']
  #allocation1 [shape = 'u32[144,128]{1,0:T(1,128)}', space=vmem, size = 0x12000, scoped, tag = 'internal scratch']
  %s0 = inlined_call_operand.vmem [shape: s32[2,3,8,1], index: 0, kind: input, shape index: {}]
  %s1 = inlined_call_operand.vmem [shape: s32[2,3,8,128], index: 1, kind: input, shape index: {}]
  %s2 = inlined_call_operand.hbm [shape: s32[3,2,8,128], index: 2, kind: output, shape index: {}]
  %s3 = sld [smem:[#allocation0]]
  $region41: #{tpu_custom_call.1} parent=0
    _
  %s5 = ssub.s32 1, %s3
  %s6 = scalar_select 0, %s5, %s3
  $region1: #{tpu_custom_call.1} parent=0
    #allocation2 [shape = 'u8[24576]{0}', space=vmem, size = 0x6000, scoped, tag = 'output window, operand 0']
    #allocation3 [shape = 's32[2]{0}', space=sflag, size = 0x8, scoped, tag = 'scoped memory for tpu_custom_call.1']
    %7 = vsyncpa [#allocation3], 0
    %s8 = scalar_lea.sflag [#allocation3], 1
    %9 = vsyncpa %s8, 0
    loop: start=0, step=1, limit=4
    $region2: #{tpu_custom_call.1} parent=1 // loop_pre_header
      _
    $region3: #{tpu_custom_call.1} parent=1 // loop_header
      %s11 = sphi 0, %s15
      %p12 = scmp.ge.s32.totalorder %s11, 4
      %s18 = sphi 0, %s30
      %s19 = sphi 0, %s26
      %s20 = sphi 0, %s18
      %s21 = sphi 0, %s19
      %s22 = sphi 0, %s20
      %s23 = sphi 0, %s21
      %s35 = sphi 0, %s37
      %s38 = sphi 0, %s35
      %s39 = sphi 0, %s38
      %s55 = sphi 0, %s39
      %s63 = sphi 0, %s65
      %s66 = sphi 0, %s63
      %s67 = sphi 0, %s66
      %s83 = sphi 0, %s67
      %s91 = sphi 0, %s93
      %s94 = sphi 0, %s91
      %s95 = sphi 0, %s94
      %s111 = sphi 0, %s95
    $region4: #{tpu_custom_call.1} parent=1 // loop_header_branch
      %14 = sbr.rel (%p12) target = $region8
    $region5: #{tpu_custom_call.1} parent=1 // loop_body
      %s16 = ssub.s32 %s11, 1
      %s17 = ssub.s32 %s11, 2
      %s24 = sadd.s32 1, %s19
      %p25 = scmp.ge.s32.totalorder %s24, 1
      %s26 = scalar_select %p25, 0, %s24
      %s27 = sadd.s32 1, %s18
      %s28 = scalar_select %p25, %s27, %s18
      %p29 = scmp.ge.s32.totalorder %s28, 2
      %s30 = scalar_select %p29, 0, %s28
      %s31 = ssub.s32 %s18, %s30
      %s32 = ssub.s32 %s19, %s26
      %s33 = sor.u32 %s31, %s32
      %p34 = scmp.eq.s32.totalorder %s33, 0
      %s36 = sadd.s32 %s35, 1
      %s37 = scalar_select %p34, %s35, %s36
      %p40 = pneg %p34
      %p41 = scmp.eq.s32.totalorder %s11, 1
      %p42 = por %p40, %p41
      %p43 = scmp.ne.s32.totalorder %s35, %s38
      %p44 = scmp.eq.s32.totalorder %s11, 0
      %p45 = por %p43, %p44
      %p46 = scmp.ne.s32.totalorder %s35, %s38
      %p47 = scmp.eq.s32.totalorder %s16, 1
      %p48 = por %p46, %p47
      %p49 = scmp.ne.s32.totalorder %s38, %s39
      %p50 = scmp.eq.s32.totalorder %s16, 0
      %p51 = por %p49, %p50
      %p52 = scmp.ne.s32.totalorder %s38, %s39
      %p53 = scmp.eq.s32.totalorder %s17, 1
      %p54 = por %p52, %p53
      %p56 = scmp.ne.s32.totalorder %s39, %s55
      %p57 = scmp.eq.s32.totalorder %s17, 0
      %p58 = por %p56, %p57
      %s59 = ssub.s32 %s18, %s30
      %s60 = ssub.s32 %s19, %s26
      %s61 = sor.u32 %s59, %s60
      %p62 = scmp.eq.s32.totalorder %s61, 0
      %s64 = sadd.s32 %s63, 1
      %s65 = scalar_select %p62, %s63, %s64
      %p68 = pneg %p62
      %p69 = scmp.eq.s32.totalorder %s11, 1
      %p70 = por %p68, %p69
      %p71 = scmp.ne.s32.totalorder %s63, %s66
      %p72 = scmp.eq.s32.totalorder %s11, 0
      %p73 = por %p71, %p72
      %p74 = scmp.ne.s32.totalorder %s63, %s66
      %p75 = scmp.eq.s32.totalorder %s16, 1
      %p76 = por %p74, %p75
      %p77 = scmp.ne.s32.totalorder %s66, %s67
      %p78 = scmp.eq.s32.totalorder %s16, 0
      %p79 = por %p77, %p78
      %p80 = scmp.ne.s32.totalorder %s66, %s67
      %p81 = scmp.eq.s32.totalorder %s17, 1
      %p82 = por %p80, %p81
      %p84 = scmp.ne.s32.totalorder %s67, %s83
      %p85 = scmp.eq.s32.totalorder %s17, 0
      %p86 = por %p84, %p85
      %s87 = ssub.s32 %s19, %s26
      %s88 = ssub.s32 %s18, %s30
      %s89 = sor.u32 %s87, %s88
      %p90 = scmp.eq.s32.totalorder %s89, 0
      %s92 = sadd.s32 %s91, 1
      %s93 = scalar_select %p90, %s91, %s92
      %p96 = pneg %p90
      %p97 = scmp.eq.s32.totalorder %s11, 1
      %p98 = por %p96, %p97
      %p99 = scmp.ne.s32.totalorder %s91, %s94
      %p100 = scmp.eq.s32.totalorder %s11, 0
      %p101 = por %p99, %p100
      %p102 = scmp.ne.s32.totalorder %s91, %s94
      %p103 = scmp.eq.s32.totalorder %s16, 1
      %p104 = por %p102, %p103
      %p105 = scmp.ne.s32.totalorder %s94, %s95
      %p106 = scmp.eq.s32.totalorder %s16, 0
      %p107 = por %p105, %p106
      %p108 = scmp.ne.s32.totalorder %s94, %s95
      %p109 = scmp.eq.s32.totalorder %s17, 1
      %p110 = por %p108, %p109
      %p112 = scmp.ne.s32.totalorder %s95, %s111
      %p113 = scmp.eq.s32.totalorder %s17, 0
      %p114 = por %p112, %p113
      %p115 = scmp.le.s32.totalorder 1, %s11
      %p116 = scmp.lt.s32.totalorder %s11, 3
      %p117 = pnand %p115, %p116
      %p118 = pneg %p117
      // Predicated region
      $region9: #{tpu_custom_call.1} parent=5 // pred_check
        _
      $region10: #{tpu_custom_call.1} parent=5 // pred_check_branch
        %120 = sbr.rel (%p117) target = $region12
      $region11: #{tpu_custom_call.1} parent=5 // pred_region
        %s121 = ssub.s32 %s11, 1
      $region12: #{tpu_custom_call.1} parent=5 // pred_fallthru
        _
      %p122 = scmp.lt.s32.totalorder %s11, 2
      // Predicated region
      $region13: #{tpu_custom_call.1} parent=5 // pred_check
        %p123 = pneg %p122
      $region14: #{tpu_custom_call.1} parent=5 // pred_check_branch
        %125 = sbr.rel (%p123) target = $region16
      $region15: #{tpu_custom_call.1} parent=5 // pred_region
        // Predicated region
        $region17: #{tpu_custom_call.1} parent=15 // pred_check
          %p126 = pneg %p45
        $region18: #{tpu_custom_call.1} parent=15 // pred_check_branch
          %128 = sbr.rel (%p126) target = $region20
        $region19: #{tpu_custom_call.1} parent=15 // pred_region
          %s129 = smul.u32 3, %s19
          %p130 = scmp.lt.s32.totalorder %s18, 1
          %s131 = scalar_select %p130, %s18, 1
          %p132 = scmp.lt.s32.totalorder %s129, 2
          %s133 = scalar_select %p132, %s129, 2
          %s134 = smul.addr %s131, 3
          %s135 = sadd.s32 %s133, %s134
          %s136 = smul.addr %s135, 8
          %s137 = scalar_lea.vmem %s0, %s136
          %s138 = smul.u32 3, %s19
        $region20: #{tpu_custom_call.1} parent=15 // pred_fallthru
          _
        // Predicated region
        $region21: #{tpu_custom_call.1} parent=15 // pred_check
          %p139 = pneg %p73
        $region22: #{tpu_custom_call.1} parent=15 // pred_check_branch
          %141 = sbr.rel (%p139) target = $region24
        $region23: #{tpu_custom_call.1} parent=15 // pred_region
          %s142 = smul.u32 3, %s19
          %p143 = scmp.lt.s32.totalorder %s18, 1
          %s144 = scalar_select %p143, %s18, 1
          %p145 = scmp.lt.s32.totalorder %s142, 2
          %s146 = scalar_select %p145, %s142, 2
          %s147 = smul.addr %s144, 3
          %s148 = sadd.s32 %s146, %s147
          %s149 = smul.addr %s148, 8
          %s150 = scalar_lea.vmem %s1, %s149
          %s151 = smul.u32 3, %s19
        $region24: #{tpu_custom_call.1} parent=15 // pred_fallthru
          _
      $region16: #{tpu_custom_call.1} parent=5 // pred_fallthru
        _
      %p152 = scmp.le.s32.totalorder 1, %s11
      %p153 = scmp.lt.s32.totalorder %s11, 3
      %p154 = pnand %p152, %p153
      %p155 = pneg %p154
      // Predicated region
      $region25: #{tpu_custom_call.1} parent=5 // pred_check
        _
      $region26: #{tpu_custom_call.1} parent=5 // pred_check_branch
        %157 = sbr.rel (%p154) target = $region28
      $region27: #{tpu_custom_call.1} parent=5 // pred_region
        %s158 = ssub.s32 %s11, 1
        %s159 = smul.u32 3, %s21
        %p160 = scmp.lt.s32.totalorder %s20, 1
        %s161 = scalar_select %p160, %s20, 1
        %p162 = scmp.lt.s32.totalorder %s159, 2
        %s163 = scalar_select %p162, %s159, 2
        %s164 = smul.addr %s161, 3
        %s165 = sadd.s32 %s163, %s164
        %s166 = smul.addr %s165, 8
        %s167 = scalar_lea.vmem %s0, %s166
        %p168 = pneg %p51
        %p169 = pneg %p48
        %s170 = smul.u32 3, %s21
        %p171 = scmp.lt.s32.totalorder %s20, 1
        %s172 = scalar_select %p171, %s20, 1
        %p173 = scmp.lt.s32.totalorder %s170, 2
        %s174 = scalar_select %p173, %s170, 2
        %s175 = smul.addr %s172, 3
        %s176 = sadd.s32 %s174, %s175
        %s177 = smul.addr %s176, 8
        %s178 = scalar_lea.vmem %s1, %s177
        %p179 = pneg %p79
        %p180 = pneg %p76
        %p181 = pneg %p107
        %p182 = pneg %p104
        %s183 = sand.u32 %s94, 1
        %s184 = scalar_lea.sflag [#allocation3], %s183
        %s185 = sand.u32 %s94, 1
        %s186 = smul.addr %s185, 24
        %s187 = scalar_lea.vmem [#allocation2], %s186
        %s188 = smul.u32 3, %s21
        %p189 = scmp.lt.s32.totalorder %s20, 1
        %s190 = scalar_select %p189, %s20, 1
        %p191 = scmp.lt.s32.totalorder %s188, 2
        %s192 = scalar_select %p191, %s188, 2
        %s193 = smul.addr %s190, 3
        %s194 = sadd.s32 %s192, %s193
        %s195 = smul.addr %s194, 8
        %s196 = scalar_lea.vmem %s0, %s195
        %s197 = smul.u32 3, %s21
        %s198 = smul.u32 3, %s21
        %p199 = scmp.lt.s32.totalorder %s20, 1
        %s200 = scalar_select %p199, %s20, 1
        %p201 = scmp.lt.s32.totalorder %s198, 2
        %s202 = scalar_select %p201, %s198, 2
        %s203 = smul.addr %s200, 3
        %s204 = sadd.s32 %s202, %s203
        %s205 = smul.addr %s204, 8
        %s206 = scalar_lea.vmem %s1, %s205
        %s207 = smul.u32 3, %s21
        %s208 = smul.u32 3, %s21
        %v209 = vld [vmem:[%s196] sm:$0xff]
        %v210 = vld [vmem:[%s196 + $0x8] sm:$0xff]
        %v211 = vld [vmem:[%s196 + $0x10] sm:$0xff]
        %v212 = vlaneseq
        %v213 = vand.u32 %v212, 127
        %v214 = vld [vmem:[%s206] sm:$0xff]
        %v215 = vld [vmem:[%s206 + $0x8] sm:$0xff]
        %v216 = vld [vmem:[%s206 + $0x10] sm:$0xff]
        %217 = vset.pattern.permute.xlu0 0
        %218 = vperm.xlu0 %217, %v209
        %v219 = vpop.permute.xlu0 %218
        %220 = vset.pattern.permute.xlu0 0
        %221 = vperm.xlu0 %220, %v210
        %v222 = vpop.permute.xlu0 %221
        %223 = vset.pattern.permute.xlu0 0
        %224 = vperm.xlu0 %223, %v211
        %v225 = vpop.permute.xlu0 %224
        %vm226 = vcmp.lt.s32.totalorder %v213, %v219
        %vm227 = vcmp.lt.s32.totalorder %v213, %v222
        %vm228 = vcmp.lt.s32.totalorder %v213, %v225
        %v229 = vsel %vm226, %v214, 0
        %v230 = vsel %vm227, %v215, 0
        %v231 = vsel %vm228, %v216, 0
        %232 = vst [vmem:[%s187] sm:$0xff] %v229
        %233 = vst [vmem:[%s187 + $0x8] sm:$0xff] %v230
        %234 = vst [vmem:[%s187 + $0x10] sm:$0xff] %v231
        %s235 = sand.u32 %s94, 1
        %s236 = scalar_lea.sflag [#allocation3], %s235
        %s237 = sand.u32 %s94, 1
        %s238 = smul.addr %s237, 24
        %s239 = scalar_lea.vmem [#allocation2], %s238
        // Predicated region
        $region29: #{tpu_custom_call.1} parent=27 // pred_check
          %p240 = pneg %p104
        $region30: #{tpu_custom_call.1} parent=27 // pred_check_branch
          %242 = sbr.rel (%p240) target = $region32
        $region31: #{tpu_custom_call.1} parent=27 // pred_region
          %s243 = smul.u32 3, %s21
          %s245 = ssub.s32 384, 384
          %246 = vsyncadd %s236, %s245
          %s247 = smul.addr %s243, 2
          %s248 = sadd.s32 %s20, %s247
          %s249 = smul.addr %s248, 128
          %s250 = scalar_lea.hbm %s2, %s249
          %s251 = sshll.u32 %s239, 4
          %s252 = int_to_ptr.vmem [resolvable:$true] %s251
          %257 = dma.vmem_to_hbm [thread:$0]  %s252, 384, %s250, %s236, 128, 256, 8
        $region32: #{tpu_custom_call.1} parent=27 // pred_fallthru
          _
      $region28: #{tpu_custom_call.1} parent=5 // pred_fallthru
        _
      %p258 = scmp.le.s32.totalorder 2, %s11
      // Predicated region
      $region33: #{tpu_custom_call.1} parent=5 // pred_check
        %p259 = pneg %p258
      $region34: #{tpu_custom_call.1} parent=5 // pred_check_branch
        %261 = sbr.rel (%p259) target = $region36
      $region35: #{tpu_custom_call.1} parent=5 // pred_region
        %s262 = ssub.s32 %s11, 2
        // Predicated region
        $region37: #{tpu_custom_call.1} parent=35 // pred_check
          %p263 = pneg %p110
        $region38: #{tpu_custom_call.1} parent=35 // pred_check_branch
          %265 = sbr.rel (%p263) target = $region40
        $region39: #{tpu_custom_call.1} parent=35 // pred_region
          %s266 = sand.u32 %s95, 1
          %s267 = scalar_lea.sflag [#allocation3], %s266
          %s268 = sand.u32 %s95, 1
          %s269 = smul.addr %s268, 24
          %s270 = scalar_lea.vmem [#allocation2], %s269
          %271 = dma.done %s267, 384
        $region40: #{tpu_custom_call.1} parent=35 // pred_fallthru
          _
      $region36: #{tpu_custom_call.1} parent=5 // pred_fallthru
        _
    $region6: #{tpu_custom_call.1} parent=1 // loop_footer
      %s15 = sadd.s32 1, %s11
    $region7: #{tpu_custom_call.1} parent=1 // loop_footer_branch
      %10 = sbr.rel target = $region3
    $region8: #{tpu_custom_call.1} parent=1 // loop_exit
      _
    %272 = vsyncpa [#allocation3], 1
    %s273 = scalar_lea.sflag [#allocation3], 1
    %274 = vsyncpa %s273, 1

</llo_original>
